<compile_context>
chip_gen: v7x
topology: tpu7x:2x2x1
jax: 0.10.0
libtpu: 0.0.40
codegen_flags: <defaults>
</compile_context>

<pallas_src>
import functools

import jax
import jax.numpy as jnp
from jax.experimental import pallas as pl
from jax.experimental.pallas import tpu as pltpu

_SUBLANE = 8


def _round_up(x, m):
    return ((x + m - 1) // m) * m


def _param_layout(time_dim, out_dim):
    """Row offsets of w1/b1/w2/b2 inside the packed buffer (8-row aligned)."""
    r_w1 = 0
    r_b1 = _round_up(time_dim, _SUBLANE)
    r_w2 = _round_up(r_b1 + 1, _SUBLANE)
    r_b2 = _round_up(r_w2 + out_dim, _SUBLANE)
    rows = _round_up(r_b2 + 1, _SUBLANE)
    return r_w1, r_b1, r_w2, r_b2, rows


def prepare_params(w1, b1, w2, b2):
    """One-time packing of the MLP params into a single f32 buffer.

    Weights are (in_features, out_features), i.e. already transposed relative
    to PyTorch's nn.Linear.weight, so the kernel computes x @ W + b.
    Call this once at init (outside the hot path); each forward call then
    issues only two input DMAs (t and the packed buffer).
    """
    time_dim, out_dim = w1.shape
    _, r_b1, r_w2, r_b2, rows = _param_layout(time_dim, out_dim)
    packed = jnp.zeros((rows, out_dim), jnp.float32)
    packed = packed.at[0:time_dim, :].set(w1.astype(jnp.float32))
    packed = packed.at[r_b1, :].set(b1.astype(jnp.float32))
    packed = packed.at[r_w2:r_w2 + out_dim, :].set(w2.astype(jnp.float32))
    packed = packed.at[r_b2, :].set(b2.astype(jnp.float32))
    return packed


def _time_embedding_kernel(t_ref, p_ref, o_ref, *, time_dim, out_dim,
                           r_b1, r_w2, r_b2):
    # Single gridless invocation: every ref is the full (VMEM-resident) array.
    t = t_ref[...]
    # Static, sublane-aligned slices into the packed parameter buffer.
    w1 = p_ref[0:time_dim, :]
    b1 = p_ref[r_b1:r_b1 + 1, :]
    w2 = p_ref[r_w2:r_w2 + out_dim, :]
    b2 = p_ref[r_b2:r_b2 + 1, :]
    # Linear 1 + bias + ReLU, accumulated in f32 on the MXU / VPU.
    h = jnp.dot(t, w1, preferred_element_type=jnp.float32) + b1
    h = jnp.maximum(h, 0.0)
    # Linear 2 + bias.
    o = jnp.dot(h, w2, preferred_element_type=jnp.float32) + b2
    o_ref[...] = o.astype(o_ref.dtype)


def time_embedding(t, packed_params, time_dim, out_dim):
    """t: (B, time_dim) -> (B, out_dim, 1, 1)  (NCHW, matching PyTorch)."""
    B = t.shape[0]
    _, r_b1, r_w2, r_b2, _ = _param_layout(time_dim, out_dim)

    kernel = functools.partial(
        _time_embedding_kernel,
        time_dim=time_dim, out_dim=out_dim,
        r_b1=r_b1, r_w2=r_w2, r_b2=r_b2)

    vmem_spec = pl.BlockSpec(memory_space=pltpu.MemorySpace.VMEM)

    out2d = pl.pallas_call(
        kernel,
        out_shape=jax.ShapeDtypeStruct((B, out_dim), t.dtype),
        in_specs=[vmem_spec, vmem_spec],
        out_specs=vmem_spec,
    )(t, packed_params)

    # Match PyTorch: mlp(t)[:, :, None, None] (metadata-only reshape).
    return out2d[:, :, None, None]


def init_params(key, time_dim, out_dim, dtype=jnp.float32):
    # Deterministic init mimicking nn.Linear's U(-1/sqrt(fan_in), 1/sqrt(fan_in)).
    k1, k2, k3, k4 = jax.random.split(key, 4)
    lim1 = 1.0 / jnp.sqrt(time_dim)
    lim2 = 1.0 / jnp.sqrt(out_dim)
    w1 = jax.random.uniform(k1, (time_dim, out_dim), dtype, -lim1, lim1)
    b1 = jax.random.uniform(k2, (out_dim,), dtype, -lim1, lim1)
    w2 = jax.random.uniform(k3, (out_dim, out_dim), dtype, -lim2, lim2)
    b2 = jax.random.uniform(k4, (out_dim,), dtype, -lim2, lim2)
    return w1, b1, w2, b2


if __name__ == "__main__":
    key = jax.random.PRNGKey(0)
    B, time_dim, out_dim = 2, 32, 64

    kt, kp = jax.random.split(key)
    t = jax.random.normal(kt, (B, time_dim), jnp.float32)
    w1, b1, w2, b2 = init_params(kp, time_dim, out_dim)

    # One-time packing (outside the per-call hot path).
    packed = prepare_params(w1, b1, w2, b2)
    packed = jax.block_until_ready(packed)

    out = time_embedding(t, packed, time_dim, out_dim)
    out = jax.block_until_ready(out)

    # Reference check (plain JAX) for semantics.
    ref = jnp.maximum(t @ w1 + b1, 0.0) @ w2 + b2
    ref = ref[:, :, None, None]
    assert out.shape == (B, out_dim, 1, 1), out.shape
    assert jnp.allclose(out, ref, atol=1e-5, rtol=1e-5)

    print("KERNEL_OK")
</pallas_src>

<mosaic_0001>
module attributes {stable_mosaic.version = 11 : i64} {
  func.func @_time_embedding_kernel(%arg0: memref<2x32xf32, #tpu.memory_space<vmem>>, %arg1: memref<112x64xf32, #tpu.memory_space<vmem>>, %arg2: memref<2x64xf32, #tpu.memory_space<vmem>>) attributes {dimension_semantics = [], scalar_prefetch = 0 : i64, scratch_operands = 0 : i64, tpu.core_type = #tpu.core_type<tc>} {
    %c0 = arith.constant 0 : index
    %c0_0 = arith.constant 0 : index
    %0 = vector.load %arg0[%c0, %c0_0] : memref<2x32xf32, #tpu.memory_space<vmem>>, vector<2x32xf32>
    %c0_1 = arith.constant 0 : index
    %c0_2 = arith.constant 0 : index
    %1 = vector.load %arg1[%c0_1, %c0_2] : memref<112x64xf32, #tpu.memory_space<vmem>>, vector<32x64xf32>
    %c32 = arith.constant 32 : index
    %c0_3 = arith.constant 0 : index
    %2 = vector.load %arg1[%c32, %c0_3] : memref<112x64xf32, #tpu.memory_space<vmem>>, vector<1x64xf32>
    %c40 = arith.constant 40 : index
    %c0_4 = arith.constant 0 : index
    %3 = vector.load %arg1[%c40, %c0_4] : memref<112x64xf32, #tpu.memory_space<vmem>>, vector<64x64xf32>
    %c104 = arith.constant 104 : index
    %c0_5 = arith.constant 0 : index
    %4 = vector.load %arg1[%c104, %c0_5] : memref<112x64xf32, #tpu.memory_space<vmem>>, vector<1x64xf32>
    %cst = arith.constant dense<0.000000e+00> : vector<2x64xf32>
    %5 = tpu.matmul %0, %1, %cst {dimension_numbers = #tpu.dot_dimension_numbers<[1], [0], [0], [1], [0, 0, 1, 1], [], []>} : vector<2x32xf32>, vector<32x64xf32>, vector<2x64xf32> -> vector<2x64xf32>
    %6 = vector.broadcast %2 : vector<1x64xf32> to vector<2x64xf32>
    %7 = arith.addf %5, %6 : vector<2x64xf32>
    %cst_6 = arith.constant 0.000000e+00 : f32
    %8 = vector.broadcast %cst_6 : f32 to vector<2x64xf32>
    %9 = arith.maximumf %7, %8 : vector<2x64xf32>
    %cst_7 = arith.constant dense<0.000000e+00> : vector<2x64xf32>
    %10 = tpu.matmul %9, %3, %cst_7 {dimension_numbers = #tpu.dot_dimension_numbers<[1], [0], [0], [1], [0, 0, 1, 1], [], []>} : vector<2x64xf32>, vector<64x64xf32>, vector<2x64xf32> -> vector<2x64xf32>
    %11 = vector.broadcast %4 : vector<1x64xf32> to vector<2x64xf32>
    %12 = arith.addf %10, %11 : vector<2x64xf32>
    %c0_8 = arith.constant 0 : index
    %c0_9 = arith.constant 0 : index
    %13 = vector.load %arg2[%c0_8, %c0_9] : memref<2x64xf32, #tpu.memory_space<vmem>>, vector<2x64xf32>
    tpu.vector_store %arg2[%c0_8, %c0_9], %12 {strides = array<i32>} : memref<2x64xf32, #tpu.memory_space<vmem>>, vector<2x64xf32>,
    return
  }
}

</mosaic_0001>

<llo_original>
// kernel: tpu_custom_call.1
$region0: #{tpu_custom_call.1}
  #allocation0 [shape = 'u32[]', space=smem, size = 0x4, offset = 0x4, fixed_abs, tag = 'smem constant byte address 0x4 - core index']
  #allocation1 [shape = 'u32[144,128]{1,0:T(1,128)}', space=vmem, size = 0x12000, scoped, tag = 'internal scratch']
  %s0 = inlined_call_operand.vmem [shape: f32[2,32], index: 0, kind: input, shape index: {}]
  %s1 = inlined_call_operand.vmem [shape: f32[112,64], index: 1, kind: input, shape index: {}]
  %s2 = inlined_call_operand.hbm [shape: f32[2,64], index: 2, kind: output, shape index: {}]
  %s3 = sld [smem:[#allocation0]]
  $region18: #{tpu_custom_call.1} parent=0
    _
  %s5 = ssub.s32 1, %s3
  %s6 = scalar_select 0, %s5, %s3
  $region1: #{tpu_custom_call.1} parent=0
    #allocation2 [shape = 'u8[1024]{0}', space=vmem, size = 0x400, scoped, tag = 'output window, operand 0, single buffered']
    #allocation3 [shape = 's32[1]{0}', space=sflag, size = 0x4, scoped, tag = 'scoped memory for tpu_custom_call.1']
    %7 = vsyncpa [#allocation3], 0
    // Predicated region
    $region2: #{tpu_custom_call.1} parent=1 // pred_check
      _
    $region3: #{tpu_custom_call.1} parent=1 // pred_check_branch
      %9 = sbr.rel (0) target = $region5
    $region4: #{tpu_custom_call.1} parent=1 // pred_region
      _
    $region5: #{tpu_custom_call.1} parent=1 // pred_fallthru
      _
    // Predicated region
    $region6: #{tpu_custom_call.1} parent=1 // pred_check
      _
    $region7: #{tpu_custom_call.1} parent=1 // pred_check_branch
      %11 = sbr.rel (0) target = $region9
    $region8: #{tpu_custom_call.1} parent=1 // pred_region
      _
    $region9: #{tpu_custom_call.1} parent=1 // pred_fallthru
      _
    %v12 = vld [vmem:[%s0] sm:$0x3]
    %v13 = vld [vmem:[%s1] sm:$0xff]
    %v14 = vld [vmem:[%s1 + $0x8] sm:$0xff]
    %v15 = vld [vmem:[%s1 + $0x10] sm:$0xff]
    %v16 = vld [vmem:[%s1 + $0x18] sm:$0xff]
    %v17 = vld [vmem:[%s1 + $0x20] sm:$0x1]
    %v18 = vld [vmem:[%s1 + $0x28] sm:$0xff]
    %v19 = vld [vmem:[%s1 + $0x30] sm:$0xff]
    %v20 = vld [vmem:[%s1 + $0x38] sm:$0xff]
    %v21 = vld [vmem:[%s1 + $0x40] sm:$0xff]
    %v22 = vld [vmem:[%s1 + $0x48] sm:$0xff]
    %v23 = vld [vmem:[%s1 + $0x50] sm:$0xff]
    %v24 = vld [vmem:[%s1 + $0x58] sm:$0xff]
    %v25 = vld [vmem:[%s1 + $0x60] sm:$0xff]
    %v26 = vld [vmem:[%s1 + $0x68] sm:$0x1]
    %v27 = vlaneseq
    %v28 = vshrl.u32 %v27, 7
    %v29 = vsub.s32 0, %v28
    %v30 = vrot.slane %v17, %v29
    %vm31 = vcmask 261120
    %v33 = vsel %vm31, %v12, 0
    %35 = vmatprep.subr.mxu0 0.0
    %36 = vmatpush1.msra.mxu0 %v13
    %37 = vmatprep.subr.mxu0 0.0
    %38 = vmatpush1.msra.mxu0 %v14
    %39 = vmatprep.subr.mxu0 0.0
    %40 = vmatpush1.msra.mxu0 %v15
    %41 = vmatprep.subr.mxu0 0.0
    %42 = vmatpush1.msra.mxu0 %v16
    %43 = vmatprep.subr.mxu0 0.0
    %44 = vmatpush1.msra.mxu0 0.0
    %45 = vmatprep.subr.mxu0 0.0
    %46 = vmatpush1.msra.mxu0 0.0
    %47 = vmatprep.subr.mxu0 0.0
    %48 = vmatpush1.msra.mxu0 0.0
    %49 = vmatprep.subr.mxu0 0.0
    %50 = vmatpush1.msra.mxu0 0.0
    %51 = vmatprep.subr.mxu0 0.0
    %52 = vmatpush1.msra.mxu0 0.0
    %53 = vmatprep.subr.mxu0 0.0
    %54 = vmatpush1.msra.mxu0 0.0
    %55 = vmatprep.subr.mxu0 0.0
    %56 = vmatpush1.msra.mxu0 0.0
    %57 = vmatprep.subr.mxu0 0.0
    %58 = vmatpush1.msra.mxu0 0.0
    %59 = vmatprep.subr.mxu0 0.0
    %60 = vmatpush1.msra.mxu0 0.0
    %61 = vmatprep.subr.mxu0 0.0
    %62 = vmatpush1.msra.mxu0 0.0
    %63 = vmatprep.subr.mxu0 0.0
    %64 = vmatpush1.msra.mxu0 0.0
    %65 = vmatprep.subr.mxu0 0.0
    %66 = vmatpush1.msra.mxu0 0.0
    %67 = vmatprep.subr.mxu0 0.0
    %68 = vmatpush1.msra.mxu0 0.0
    %69 = vmatprep.subr.mxu0 0.0
    %70 = vmatpush1.msra.mxu0 0.0
    %71 = vmatprep.subr.mxu0 0.0
    %72 = vmatpush1.msra.mxu0 0.0
    %73 = vmatprep.subr.mxu0 0.0
    %74 = vmatpush1.msra.mxu0 0.0
    %75 = vmatprep.subr.mxu0 0.0
    %76 = vmatpush1.msra.mxu0 0.0
    %77 = vmatprep.subr.mxu0 0.0
    %78 = vmatpush1.msra.mxu0 0.0
    %79 = vmatprep.subr.mxu0 0.0
    %80 = vmatpush1.msra.mxu0 0.0
    %81 = vmatprep.subr.mxu0 0.0
    %82 = vmatpush1.msra.mxu0 0.0
    %83 = vmatprep.subr.mxu0 0.0
    %84 = vmatpush1.msra.mxu0 0.0
    %85 = vmatprep.subr.mxu0 0.0
    %86 = vmatpush1.msra.mxu0 0.0
    %87 = vmatprep.subr.mxu0 0.0
    %88 = vmatpush1.msra.mxu0 0.0
    %89 = vmatprep.subr.mxu0 0.0
    %90 = vmatpush1.msra.mxu0 0.0
    %91 = vmatprep.subr.mxu0 0.0
    %92 = vmatpush1.msra.mxu0 0.0
    %93 = vmatprep.subr.mxu0 0.0
    %94 = vmatpush1.msra.mxu0 0.0
    %95 = vmatprep.subr.mxu0 0.0
    %96 = vmatpush1.msra.mxu0 0.0
    %97 = vmatprep.subr.mxu0 0.0
    %98 = vmatpush1.msra.mxu0 0.0
    %99 = vmatprep.mubr.f32.mxu0 0.0
    %100 = vmatmul.mubr.f32.gmra.mrb[0].mxu0 %v33
    %v101 = vpop.f32.mrb[0].mxu0
    %v102 = vadd.f32 %v30, %v101
    %v103 = vpop.f32.mrb[0].mxu0
    %104 = vdwg.mxu0
    %v105 = vmax.f32 %v102, 0.0
    %v106 = vlaneseq
    %v107 = vshrl.u32 %v106, 7
    %v108 = vsub.s32 0, %v107
    %v109 = vrot.slane %v26, %v108
    %vm110 = vcmask 523264
    %v112 = vsel %vm110, %v105, 0
    %114 = vmatprep.subr.mxu0 0.0
    %115 = vmatpush1.msra.mxu0 %v18
    %116 = vmatprep.subr.mxu0 0.0
    %117 = vmatpush1.msra.mxu0 %v19
    %118 = vmatprep.subr.mxu0 0.0
    %119 = vmatpush1.msra.mxu0 %v20
    %120 = vmatprep.subr.mxu0 0.0
    %121 = vmatpush1.msra.mxu0 %v21
    %122 = vmatprep.subr.mxu0 0.0
    %123 = vmatpush1.msra.mxu0 %v22
    %124 = vmatprep.subr.mxu0 0.0
    %125 = vmatpush1.msra.mxu0 %v23
    %126 = vmatprep.subr.mxu0 0.0
    %127 = vmatpush1.msra.mxu0 %v24
    %128 = vmatprep.subr.mxu0 0.0
    %129 = vmatpush1.msra.mxu0 %v25
    %130 = vmatprep.subr.mxu0 0.0
    %131 = vmatpush1.msra.mxu0 0.0
    %132 = vmatprep.subr.mxu0 0.0
    %133 = vmatpush1.msra.mxu0 0.0
    %134 = vmatprep.subr.mxu0 0.0
    %135 = vmatpush1.msra.mxu0 0.0
    %136 = vmatprep.subr.mxu0 0.0
    %137 = vmatpush1.msra.mxu0 0.0
    %138 = vmatprep.subr.mxu0 0.0
    %139 = vmatpush1.msra.mxu0 0.0
    %140 = vmatprep.subr.mxu0 0.0
    %141 = vmatpush1.msra.mxu0 0.0
    %142 = vmatprep.subr.mxu0 0.0
    %143 = vmatpush1.msra.mxu0 0.0
    %144 = vmatprep.subr.mxu0 0.0
    %145 = vmatpush1.msra.mxu0 0.0
    %146 = vmatprep.subr.mxu0 0.0
    %147 = vmatpush1.msra.mxu0 0.0
    %148 = vmatprep.subr.mxu0 0.0
    %149 = vmatpush1.msra.mxu0 0.0
    %150 = vmatprep.subr.mxu0 0.0
    %151 = vmatpush1.msra.mxu0 0.0
    %152 = vmatprep.subr.mxu0 0.0
    %153 = vmatpush1.msra.mxu0 0.0
    %154 = vmatprep.subr.mxu0 0.0
    %155 = vmatpush1.msra.mxu0 0.0
    %156 = vmatprep.subr.mxu0 0.0
    %157 = vmatpush1.msra.mxu0 0.0
    %158 = vmatprep.subr.mxu0 0.0
    %159 = vmatpush1.msra.mxu0 0.0
    %160 = vmatprep.subr.mxu0 0.0
    %161 = vmatpush1.msra.mxu0 0.0
    %162 = vmatprep.subr.mxu0 0.0
    %163 = vmatpush1.msra.mxu0 0.0
    %164 = vmatprep.subr.mxu0 0.0
    %165 = vmatpush1.msra.mxu0 0.0
    %166 = vmatprep.subr.mxu0 0.0
    %167 = vmatpush1.msra.mxu0 0.0
    %168 = vmatprep.subr.mxu0 0.0
    %169 = vmatpush1.msra.mxu0 0.0
    %170 = vmatprep.subr.mxu0 0.0
    %171 = vmatpush1.msra.mxu0 0.0
    %172 = vmatprep.subr.mxu0 0.0
    %173 = vmatpush1.msra.mxu0 0.0
    %174 = vmatprep.subr.mxu0 0.0
    %175 = vmatpush1.msra.mxu0 0.0
    %176 = vmatprep.subr.mxu0 0.0
    %177 = vmatpush1.msra.mxu0 0.0
    %178 = vmatprep.mubr.f32.mxu0 0.0
    %179 = vmatmul.mubr.f32.gmra.mrb[0].mxu0 %v112
    %v180 = vpop.f32.mrb[0].mxu0
    %v181 = vadd.f32 %v109, %v180
    %v182 = vpop.f32.mrb[0].mxu0
    %183 = vdwg.mxu0
    %vm184 = vcmask 517120
    %185 = vst.msk [vmem:[#allocation2] sm:$0x3] %vm184, %v181
    // Predicated region
    $region10: #{tpu_custom_call.1} parent=1 // pred_check
      _
    $region11: #{tpu_custom_call.1} parent=1 // pred_check_branch
      %187 = sbr.rel (0) target = $region13
    $region12: #{tpu_custom_call.1} parent=1 // pred_region
      %s189 = ssub.s32 32, 32
      %190 = vsyncadd [#allocation3], %s189
      %s192 = sshll.u32 [#allocation2], 4
      %s193 = int_to_ptr.vmem [resolvable:$true] %s192
      %195 = dma.vmem_to_hbm [thread:$0]  %s193, 32, %s2, [#allocation3]
    $region13: #{tpu_custom_call.1} parent=1 // pred_fallthru
      _
    // Predicated region
    $region14: #{tpu_custom_call.1} parent=1 // pred_check
      _
    $region15: #{tpu_custom_call.1} parent=1 // pred_check_branch
      %197 = sbr.rel (0) target = $region17
    $region16: #{tpu_custom_call.1} parent=1 // pred_region
      %198 = dma.done [#allocation3], 32
    $region17: #{tpu_custom_call.1} parent=1 // pred_fallthru
      _
    %199 = vsyncpa [#allocation3], 1

</llo_original>
